<compile_context>
chip_gen: v7x
topology: tpu7x:2x2x1
jax: 0.10.0
libtpu: 0.0.40
codegen_flags: <defaults>
</compile_context>

<pallas_src>
import jax
import jax.numpy as jnp
from jax.experimental import pallas as pl
from jax.experimental.pallas import tpu as pltpu

LANES = 128      # lane-dense width used for all activations / weights
N_LAYERS = 6     # 5 hidden + 1 output


def brain_kernel(x_ref, w_ref, b_ref, o_ref):
    # x_ref : (B, 128)  f32   real features in cols [0, inp), rest exactly 0
    # w_ref : (6, 128, 128) bf16  layer i weights in [:d_in, :d_out], rest 0
    # b_ref : (6, 1, 128)   f32   layer i bias in [:d_out], rest 0
    # o_ref : (B, 128)  f32   real outputs in cols [0, out), rest 0
    x = x_ref[...]

    # ---- MinMaxScaler(feature_range=(0,1)).fit_transform(x) ----
    # per-feature (column) min/max over the batch axis.
    xmin = jnp.min(x, axis=0, keepdims=True)
    xmax = jnp.max(x, axis=0, keepdims=True)
    rng = xmax - xmin
    # sklearn's _handle_zeros_in_scale: constant features get scale 1
    # (this also covers the zero-padded lanes, which stay exactly 0).
    rng = jnp.where(rng == 0.0, 1.0, rng)
    h = (x - xmin) * pl.reciprocal(rng, approx=True)

    # ---- 5 x (Linear + ReLU), then Linear; bf16 MXU with f32 accumulation ----
    for i in range(N_LAYERS):
        z = jnp.dot(h.astype(jnp.bfloat16), w_ref[i],
                    preferred_element_type=jnp.float32) + b_ref[i]
        h = jnp.maximum(z, 0.0) if i < N_LAYERS - 1 else z

    o_ref[...] = h


def pack_params(params):
    """Pack per-layer (W (in,out), b (1,out)) into zero-padded 128-lane slabs."""
    w_slab = jnp.zeros((N_LAYERS, LANES, LANES), jnp.float32)
    b_slab = jnp.zeros((N_LAYERS, 1, LANES), jnp.float32)
    for i, (w, b) in enumerate(params):
        d_in, d_out = w.shape
        w_slab = w_slab.at[i, :d_in, :d_out].set(w)
        b_slab = b_slab.at[i, 0, :d_out].set(jnp.reshape(b, (-1,)))
    return w_slab.astype(jnp.bfloat16), b_slab


def brain_forward(x, params):
    """x: (B, inp) float32; params: list of (W (in,out), b (1,out)) pairs."""
    B, inp = x.shape
    out_dim = params[-1][0].shape[1]

    x_pad = jnp.zeros((B, LANES), jnp.float32).at[:, :inp].set(x)
    w_slab, b_slab = pack_params(params)

    out = pl.pallas_call(
        brain_kernel,
        out_shape=jax.ShapeDtypeStruct((B, LANES), jnp.float32),
        in_specs=[pl.BlockSpec(memory_space=pltpu.MemorySpace.VMEM)] * 3,
        out_specs=pl.BlockSpec(memory_space=pltpu.MemorySpace.VMEM),
    )(x_pad, w_slab, b_slab)

    return out[:, :out_dim]


def make_params(key, sizes):
    """Deterministic init mimicking nn.Linear (uniform(-1/sqrt(in), 1/sqrt(in)))."""
    params = []
    for d_in, d_out in zip(sizes[:-1], sizes[1:]):
        key, kw, kb = jax.random.split(key, 3)
        bound = 1.0 / jnp.sqrt(jnp.float32(d_in))
        w = jax.random.uniform(kw, (d_in, d_out), jnp.float32, -bound, bound)
        b = jax.random.uniform(kb, (1, d_out), jnp.float32, -bound, bound)
        params.append((w, b))
    return params


def reference_forward(x, params):
    """Pure f32 JAX reference of Brain.forward (incl. MinMaxScaler)."""
    xmin = jnp.min(x, axis=0, keepdims=True)
    xmax = jnp.max(x, axis=0, keepdims=True)
    rng = jnp.where(xmax - xmin == 0.0, 1.0, xmax - xmin)
    h = (x - xmin) / rng
    for i, (w, b) in enumerate(params):
        h = h @ w + b
        if i < len(params) - 1:
            h = jnp.maximum(h, 0.0)
    return h


if __name__ == "__main__":
    key = jax.random.PRNGKey(0)
    kx, kp = jax.random.split(key)

    # Brain(inputSize=16, h1=32, h2=32, h3=32, h4=32, h5=32, outputSize=4, lr=...)
    B, inp, h1, h2, h3, h4, h5, out = 8, 16, 32, 32, 32, 32, 32, 4
    sizes = [inp, h1, h2, h3, h4, h5, out]

    x = jax.random.normal(kx, (B, inp), jnp.float32) * 3.0 + 1.0
    params = make_params(kp, sizes)

    y = brain_forward(x, params)
    jax.block_until_ready(y)

    y_ref = reference_forward(x, params)
    assert y.shape == (B, out)
    # bf16 matmuls + approx reciprocal vs. f32 reference -> relaxed tolerance.
    assert jnp.allclose(y, y_ref, atol=3e-2, rtol=3e-2), "mismatch vs reference"

    print("KERNEL_OK")
</pallas_src>

<mosaic_0001>
module attributes {stable_mosaic.version = 11 : i64} {
  func.func @brain_kernel(%arg0: memref<8x128xf32, #tpu.memory_space<vmem>>, %arg1: memref<6x128x128xbf16, #tpu.memory_space<vmem>>, %arg2: memref<6x1x128xf32, #tpu.memory_space<vmem>>, %arg3: memref<8x128xf32, #tpu.memory_space<vmem>>) attributes {dimension_semantics = [], scalar_prefetch = 0 : i64, scratch_operands = 0 : i64, tpu.core_type = #tpu.core_type<tc>} {
    %c0 = arith.constant 0 : index
    %c0_0 = arith.constant 0 : index
    %0 = vector.load %arg0[%c0, %c0_0] : memref<8x128xf32, #tpu.memory_space<vmem>>, vector<8x128xf32>
    %cst = arith.constant dense<0x7F800000> : vector<128xf32>
    %1 = vector.multi_reduction <minimumf>, %0, %cst [0] : vector<8x128xf32> to vector<128xf32>
    %2 = vector.shape_cast %1 : vector<128xf32> to vector<1x128xf32>
    %cst_1 = arith.constant dense<0xFF800000> : vector<128xf32>
    %3 = vector.multi_reduction <maximumf>, %0, %cst_1 [0] : vector<8x128xf32> to vector<128xf32>
    %4 = vector.shape_cast %3 : vector<128xf32> to vector<1x128xf32>
    %5 = arith.subf %4, %2 : vector<1x128xf32>
    %cst_2 = arith.constant 0.000000e+00 : f32
    %6 = vector.broadcast %cst_2 : f32 to vector<1x128xf32>
    %7 = arith.cmpf oeq, %5, %6 : vector<1x128xf32>
    %cst_3 = arith.constant 1.000000e+00 : f32
    %8 = vector.broadcast %cst_3 : f32 to vector<1x128xf32>
    %9 = arith.select %7, %8, %5 : vector<1x128xi1>, vector<1x128xf32>
    %10 = vector.broadcast %2 : vector<1x128xf32> to vector<8x128xf32>
    %11 = arith.subf %0, %10 : vector<8x128xf32>
    %12 = tpu.reciprocal %9 {approx = true} : vector<1x128xf32> -> vector<1x128xf32>
    %13 = vector.broadcast %12 : vector<1x128xf32> to vector<8x128xf32>
    %14 = arith.mulf %11, %13 : vector<8x128xf32>
    %15 = arith.truncf %14 : vector<8x128xf32> to vector<8x128xbf16>
    %c0_4 = arith.constant 0 : index
    %c0_5 = arith.constant 0 : index
    %c0_6 = arith.constant 0 : index
    %16 = vector.load %arg1[%c0_4, %c0_5, %c0_6] : memref<6x128x128xbf16, #tpu.memory_space<vmem>>, vector<1x128x128xbf16>
    %17 = vector.shape_cast %16 : vector<1x128x128xbf16> to vector<128x128xbf16>
    %cst_7 = arith.constant dense<0.000000e+00> : vector<8x128xf32>
    %18 = tpu.matmul %15, %17, %cst_7 {dimension_numbers = #tpu.dot_dimension_numbers<[1], [0], [0], [1], [0, 0, 1, 1], [], []>} : vector<8x128xbf16>, vector<128x128xbf16>, vector<8x128xf32> -> vector<8x128xf32>
    %c0_8 = arith.constant 0 : index
    %c0_9 = arith.constant 0 : index
    %c0_10 = arith.constant 0 : index
    %19 = vector.load %arg2[%c0_8, %c0_9, %c0_10] : memref<6x1x128xf32, #tpu.memory_space<vmem>>, vector<1x1x128xf32>
    %20 = vector.shape_cast %19 : vector<1x1x128xf32> to vector<1x128xf32>
    %21 = vector.broadcast %20 : vector<1x128xf32> to vector<8x128xf32>
    %22 = arith.addf %18, %21 : vector<8x128xf32>
    %cst_11 = arith.constant 0.000000e+00 : f32
    %23 = vector.broadcast %cst_11 : f32 to vector<8x128xf32>
    %24 = arith.maximumf %22, %23 : vector<8x128xf32>
    %25 = arith.truncf %24 : vector<8x128xf32> to vector<8x128xbf16>
    %c1 = arith.constant 1 : index
    %c0_12 = arith.constant 0 : index
    %c0_13 = arith.constant 0 : index
    %26 = vector.load %arg1[%c1, %c0_12, %c0_13] : memref<6x128x128xbf16, #tpu.memory_space<vmem>>, vector<1x128x128xbf16>
    %27 = vector.shape_cast %26 : vector<1x128x128xbf16> to vector<128x128xbf16>
    %cst_14 = arith.constant dense<0.000000e+00> : vector<8x128xf32>
    %28 = tpu.matmul %25, %27, %cst_14 {dimension_numbers = #tpu.dot_dimension_numbers<[1], [0], [0], [1], [0, 0, 1, 1], [], []>} : vector<8x128xbf16>, vector<128x128xbf16>, vector<8x128xf32> -> vector<8x128xf32>
    %c1_15 = arith.constant 1 : index
    %c0_16 = arith.constant 0 : index
    %c0_17 = arith.constant 0 : index
    %29 = vector.load %arg2[%c1_15, %c0_16, %c0_17] : memref<6x1x128xf32, #tpu.memory_space<vmem>>, vector<1x1x128xf32>
    %30 = vector.shape_cast %29 : vector<1x1x128xf32> to vector<1x128xf32>
    %31 = vector.broadcast %30 : vector<1x128xf32> to vector<8x128xf32>
    %32 = arith.addf %28, %31 : vector<8x128xf32>
    %cst_18 = arith.constant 0.000000e+00 : f32
    %33 = vector.broadcast %cst_18 : f32 to vector<8x128xf32>
    %34 = arith.maximumf %32, %33 : vector<8x128xf32>
    %35 = arith.truncf %34 : vector<8x128xf32> to vector<8x128xbf16>
    %c2 = arith.constant 2 : index
    %c0_19 = arith.constant 0 : index
    %c0_20 = arith.constant 0 : index
    %36 = vector.load %arg1[%c2, %c0_19, %c0_20] : memref<6x128x128xbf16, #tpu.memory_space<vmem>>, vector<1x128x128xbf16>
    %37 = vector.shape_cast %36 : vector<1x128x128xbf16> to vector<128x128xbf16>
    %cst_21 = arith.constant dense<0.000000e+00> : vector<8x128xf32>
    %38 = tpu.matmul %35, %37, %cst_21 {dimension_numbers = #tpu.dot_dimension_numbers<[1], [0], [0], [1], [0, 0, 1, 1], [], []>} : vector<8x128xbf16>, vector<128x128xbf16>, vector<8x128xf32> -> vector<8x128xf32>
    %c2_22 = arith.constant 2 : index
    %c0_23 = arith.constant 0 : index
    %c0_24 = arith.constant 0 : index
    %39 = vector.load %arg2[%c2_22, %c0_23, %c0_24] : memref<6x1x128xf32, #tpu.memory_space<vmem>>, vector<1x1x128xf32>
    %40 = vector.shape_cast %39 : vector<1x1x128xf32> to vector<1x128xf32>
    %41 = vector.broadcast %40 : vector<1x128xf32> to vector<8x128xf32>
    %42 = arith.addf %38, %41 : vector<8x128xf32>
    %cst_25 = arith.constant 0.000000e+00 : f32
    %43 = vector.broadcast %cst_25 : f32 to vector<8x128xf32>
    %44 = arith.maximumf %42, %43 : vector<8x128xf32>
    %45 = arith.truncf %44 : vector<8x128xf32> to vector<8x128xbf16>
    %c3 = arith.constant 3 : index
    %c0_26 = arith.constant 0 : index
    %c0_27 = arith.constant 0 : index
    %46 = vector.load %arg1[%c3, %c0_26, %c0_27] : memref<6x128x128xbf16, #tpu.memory_space<vmem>>, vector<1x128x128xbf16>
    %47 = vector.shape_cast %46 : vector<1x128x128xbf16> to vector<128x128xbf16>
    %cst_28 = arith.constant dense<0.000000e+00> : vector<8x128xf32>
    %48 = tpu.matmul %45, %47, %cst_28 {dimension_numbers = #tpu.dot_dimension_numbers<[1], [0], [0], [1], [0, 0, 1, 1], [], []>} : vector<8x128xbf16>, vector<128x128xbf16>, vector<8x128xf32> -> vector<8x128xf32>
    %c3_29 = arith.constant 3 : index
    %c0_30 = arith.constant 0 : index
    %c0_31 = arith.constant 0 : index
    %49 = vector.load %arg2[%c3_29, %c0_30, %c0_31] : memref<6x1x128xf32, #tpu.memory_space<vmem>>, vector<1x1x128xf32>
    %50 = vector.shape_cast %49 : vector<1x1x128xf32> to vector<1x128xf32>
    %51 = vector.broadcast %50 : vector<1x128xf32> to vector<8x128xf32>
    %52 = arith.addf %48, %51 : vector<8x128xf32>
    %cst_32 = arith.constant 0.000000e+00 : f32
    %53 = vector.broadcast %cst_32 : f32 to vector<8x128xf32>
    %54 = arith.maximumf %52, %53 : vector<8x128xf32>
    %55 = arith.truncf %54 : vector<8x128xf32> to vector<8x128xbf16>
    %c4 = arith.constant 4 : index
    %c0_33 = arith.constant 0 : index
    %c0_34 = arith.constant 0 : index
    %56 = vector.load %arg1[%c4, %c0_33, %c0_34] : memref<6x128x128xbf16, #tpu.memory_space<vmem>>, vector<1x128x128xbf16>
    %57 = vector.shape_cast %56 : vector<1x128x128xbf16> to vector<128x128xbf16>
    %cst_35 = arith.constant dense<0.000000e+00> : vector<8x128xf32>
    %58 = tpu.matmul %55, %57, %cst_35 {dimension_numbers = #tpu.dot_dimension_numbers<[1], [0], [0], [1], [0, 0, 1, 1], [], []>} : vector<8x128xbf16>, vector<128x128xbf16>, vector<8x128xf32> -> vector<8x128xf32>
    %c4_36 = arith.constant 4 : index
    %c0_37 = arith.constant 0 : index
    %c0_38 = arith.constant 0 : index
    %59 = vector.load %arg2[%c4_36, %c0_37, %c0_38] : memref<6x1x128xf32, #tpu.memory_space<vmem>>, vector<1x1x128xf32>
    %60 = vector.shape_cast %59 : vector<1x1x128xf32> to vector<1x128xf32>
    %61 = vector.broadcast %60 : vector<1x128xf32> to vector<8x128xf32>
    %62 = arith.addf %58, %61 : vector<8x128xf32>
    %cst_39 = arith.constant 0.000000e+00 : f32
    %63 = vector.broadcast %cst_39 : f32 to vector<8x128xf32>
    %64 = arith.maximumf %62, %63 : vector<8x128xf32>
    %65 = arith.truncf %64 : vector<8x128xf32> to vector<8x128xbf16>
    %c5 = arith.constant 5 : index
    %c0_40 = arith.constant 0 : index
    %c0_41 = arith.constant 0 : index
    %66 = vector.load %arg1[%c5, %c0_40, %c0_41] : memref<6x128x128xbf16, #tpu.memory_space<vmem>>, vector<1x128x128xbf16>
    %67 = vector.shape_cast %66 : vector<1x128x128xbf16> to vector<128x128xbf16>
    %cst_42 = arith.constant dense<0.000000e+00> : vector<8x128xf32>
    %68 = tpu.matmul %65, %67, %cst_42 {dimension_numbers = #tpu.dot_dimension_numbers<[1], [0], [0], [1], [0, 0, 1, 1], [], []>} : vector<8x128xbf16>, vector<128x128xbf16>, vector<8x128xf32> -> vector<8x128xf32>
    %c5_43 = arith.constant 5 : index
    %c0_44 = arith.constant 0 : index
    %c0_45 = arith.constant 0 : index
    %69 = vector.load %arg2[%c5_43, %c0_44, %c0_45] : memref<6x1x128xf32, #tpu.memory_space<vmem>>, vector<1x1x128xf32>
    %70 = vector.shape_cast %69 : vector<1x1x128xf32> to vector<1x128xf32>
    %71 = vector.broadcast %70 : vector<1x128xf32> to vector<8x128xf32>
    %72 = arith.addf %68, %71 : vector<8x128xf32>
    %c0_46 = arith.constant 0 : index
    %c0_47 = arith.constant 0 : index
    %73 = vector.load %arg3[%c0_46, %c0_47] : memref<8x128xf32, #tpu.memory_space<vmem>>, vector<8x128xf32>
    tpu.vector_store %arg3[%c0_46, %c0_47], %72 {strides = array<i32>} : memref<8x128xf32, #tpu.memory_space<vmem>>, vector<8x128xf32>,
    return
  }
}

</mosaic_0001>

<llo_original>
// kernel: tpu_custom_call.1
$region0: #{tpu_custom_call.1}
  #allocation0 [shape = 'u32[]', space=smem, size = 0x4, offset = 0x4, fixed_abs, tag = 'smem constant byte address 0x4 - core index']
  #allocation1 [shape = 'u32[144,128]{1,0:T(1,128)}', space=vmem, size = 0x12000, scoped, tag = 'internal scratch']
  %s0 = inlined_call_operand.hbm [shape: f32[8,128], index: 0, kind: input, shape index: {}]
  %s1 = inlined_call_operand.hbm [shape: bf16[6,128,128], index: 1, kind: input, shape index: {}]
  %s2 = inlined_call_operand.vmem [shape: f32[6,1,128], index: 2, kind: input, shape index: {}]
  %s3 = inlined_call_operand.hbm [shape: f32[8,128], index: 3, kind: output, shape index: {}]
  %s4 = sld [smem:[#allocation0]]
  $region30: #{tpu_custom_call.1} parent=0
    _
  %s6 = ssub.s32 1, %s4
  %s7 = scalar_select 0, %s6, %s4
  $region1: #{tpu_custom_call.1} parent=0
    #allocation2 [shape = 'u8[4096]{0}', space=vmem, size = 0x1000, scoped, tag = 'input window, operand 0, single buffered']
    #allocation3 [shape = 's32[1]{0}', space=sflag, size = 0x4, scoped, tag = 'scoped memory for tpu_custom_call.1']
    #allocation4 [shape = 's32[1]{0}', space=sflag, size = 0x4, scoped, tag = 'scoped memory for tpu_custom_call.1']
    #allocation5 [shape = 'u8[196608]{0}', space=vmem, size = 0x30000, scoped, tag = 'input window, operand 1, single buffered']
    #allocation6 [shape = 's32[1]{0}', space=sflag, size = 0x4, scoped, tag = 'scoped memory for tpu_custom_call.1']
    #allocation7 [shape = 'u8[4096]{0}', space=vmem, size = 0x1000, scoped, tag = 'output window, operand 0, single buffered']
    %8 = vsyncpa [#allocation3], 0
    %9 = vsyncpa [#allocation6], 0
    %10 = vsyncpa [#allocation4], 0
    // Predicated region
    $region2: #{tpu_custom_call.1} parent=1 // pred_check
      _
    $region3: #{tpu_custom_call.1} parent=1 // pred_check_branch
      %12 = sbr.rel (0) target = $region5
    $region4: #{tpu_custom_call.1} parent=1 // pred_region
      %s14 = ssub.s32 128, 128
      %15 = vsyncadd [#allocation3], %s14
      %s17 = sshll.u32 [#allocation2], 4
      %s18 = int_to_ptr.vmem [resolvable:$true] %s17
      %20 = dma.hbm_to_vmem [thread:$0]  %s0, 128, %s18, [#allocation3]
    $region5: #{tpu_custom_call.1} parent=1 // pred_fallthru
      _
    // Predicated region
    $region6: #{tpu_custom_call.1} parent=1 // pred_check
      _
    $region7: #{tpu_custom_call.1} parent=1 // pred_check_branch
      %22 = sbr.rel (0) target = $region9
    $region8: #{tpu_custom_call.1} parent=1 // pred_region
      %s24 = ssub.s32 6144, 6144
      %25 = vsyncadd [#allocation6], %s24
      %s26 = sshll.u32 [#allocation5], 4
      %s27 = int_to_ptr.vmem [resolvable:$true] %s26
      %32 = dma.hbm_to_vmem [thread:$0]  %s1, 6144, %s27, [#allocation6], 64, 64, 4
    $region9: #{tpu_custom_call.1} parent=1 // pred_fallthru
      _
    // Predicated region
    $region10: #{tpu_custom_call.1} parent=1 // pred_check
      _
    $region11: #{tpu_custom_call.1} parent=1 // pred_check_branch
      %34 = sbr.rel (0) target = $region13
    $region12: #{tpu_custom_call.1} parent=1 // pred_region
      _
    $region13: #{tpu_custom_call.1} parent=1 // pred_fallthru
      _
    // Predicated region
    $region14: #{tpu_custom_call.1} parent=1 // pred_check
      _
    $region15: #{tpu_custom_call.1} parent=1 // pred_check_branch
      %36 = sbr.rel (0) target = $region17
    $region16: #{tpu_custom_call.1} parent=1 // pred_region
      %37 = dma.done [#allocation3], 128
    $region17: #{tpu_custom_call.1} parent=1 // pred_fallthru
      _
    // Predicated region
    $region18: #{tpu_custom_call.1} parent=1 // pred_check
      _
    $region19: #{tpu_custom_call.1} parent=1 // pred_check_branch
      %39 = sbr.rel (0) target = $region21
    $region20: #{tpu_custom_call.1} parent=1 // pred_region
      %40 = dma.done [#allocation6], 6144
    $region21: #{tpu_custom_call.1} parent=1 // pred_fallthru
      _
    %v42 = vld [vmem:[#allocation2] sm:$0xff]
    %v43 = vrot.slane %v42, 4
    %v44 = vmin.f32 %v42, %v43
    %v45 = vrot.slane %v44, 2
    %v46 = vmin.f32 %v44, %v45
    %v47 = vrot.slane %v46, 1
    %v48 = vmin.f32 %v46, %v47
    %v49 = vrot.slane %v42, 4
    %v50 = vmax.f32 %v42, %v49
    %v51 = vrot.slane %v50, 2
    %v52 = vmax.f32 %v50, %v51
    %v53 = vrot.slane %v52, 1
    %v54 = vmax.f32 %v52, %v53
    %v55 = vsub.f32 %v54, %v48
    %vm56 = vcmp.eq.f32.partialorder %v55, 0.0
    %v57 = vsel %vm56, 1.0, %v55
    %v58 = vsub.f32 %v42, %v48
    %v59 = vrcp.pop %v57
    %v60 = vmul.f32 %v58, %v59
    %v61 = vpack.c.bf16 %v60, %v60
    %v62 = vld [vmem:[#allocation5] sm:$0xf]
    %v63 = vld [vmem:[#allocation5 + $0x4] sm:$0xf]
    %v64 = vld [vmem:[#allocation5 + $0x8] sm:$0xf]
    %v65 = vld [vmem:[#allocation5 + $0xc] sm:$0xf]
    %v66 = vld [vmem:[#allocation5 + $0x10] sm:$0xf]
    %v67 = vld [vmem:[#allocation5 + $0x14] sm:$0xf]
    %v68 = vld [vmem:[#allocation5 + $0x18] sm:$0xf]
    %v69 = vld [vmem:[#allocation5 + $0x1c] sm:$0xf]
    %v70 = vld [vmem:[#allocation5 + $0x20] sm:$0xf]
    %v71 = vld [vmem:[#allocation5 + $0x24] sm:$0xf]
    %v72 = vld [vmem:[#allocation5 + $0x28] sm:$0xf]
    %v73 = vld [vmem:[#allocation5 + $0x2c] sm:$0xf]
    %v74 = vld [vmem:[#allocation5 + $0x30] sm:$0xf]
    %v75 = vld [vmem:[#allocation5 + $0x34] sm:$0xf]
    %v76 = vld [vmem:[#allocation5 + $0x38] sm:$0xf]
    %v77 = vld [vmem:[#allocation5 + $0x3c] sm:$0xf]
    %v78 = vld [vmem:[%s2] sm:$0x1]
    %v80 = vlaneseq
    %v81 = vshrl.u32 %v80, 7
    %v82 = vsub.s32 0, %v81
    %v83 = vrot.slane %v78, %v82
    %v101 = vunpack.c.l.b16 %v62
    %v102 = vunpack.c.l.b16 %v63
    %v103 = vunpack.c.l.b16 %v64
    %v104 = vunpack.c.l.b16 %v65
    %v105 = vunpack.c.l.b16 %v66
    %v106 = vunpack.c.l.b16 %v67
    %v107 = vunpack.c.l.b16 %v68
    %v108 = vunpack.c.l.b16 %v69
    %v109 = vunpack.c.l.b16 %v70
    %v110 = vunpack.c.l.b16 %v71
    %v111 = vunpack.c.l.b16 %v72
    %v112 = vunpack.c.l.b16 %v73
    %v113 = vunpack.c.l.b16 %v74
    %v114 = vunpack.c.l.b16 %v75
    %v115 = vunpack.c.l.b16 %v76
    %v116 = vunpack.c.l.b16 %v77
    %v117 = vpack.c.b16 %v102, %v101
    %v118 = vpack.c.b16 %v104, %v103
    %v119 = vpack.c.b16 %v106, %v105
    %v120 = vpack.c.b16 %v108, %v107
    %v121 = vpack.c.b16 %v110, %v109
    %v122 = vpack.c.b16 %v112, %v111
    %v123 = vpack.c.b16 %v114, %v113
    %v124 = vpack.c.b16 %v116, %v115
    %133 = vmatprep.subr.bf16.mxu0 0
    %134 = vmatpush1.bf16.msra.mxu0 %v117
    %135 = vmatprep.subr.bf16.mxu0 0
    %136 = vmatpush1.bf16.msra.mxu0 %v118
    %137 = vmatprep.subr.bf16.mxu0 0
    %138 = vmatpush1.bf16.msra.mxu0 %v119
    %139 = vmatprep.subr.bf16.mxu0 0
    %140 = vmatpush1.bf16.msra.mxu0 %v120
    %141 = vmatprep.subr.bf16.mxu0 0
    %142 = vmatpush1.bf16.msra.mxu0 %v121
    %143 = vmatprep.subr.bf16.mxu0 0
    %144 = vmatpush1.bf16.msra.mxu0 %v122
    %145 = vmatprep.subr.bf16.mxu0 0
    %146 = vmatpush1.bf16.msra.mxu0 %v123
    %147 = vmatprep.subr.bf16.mxu0 0
    %148 = vmatpush1.bf16.msra.mxu0 %v124
    %149 = vmatprep.subr.bf16.mxu0 0
    %150 = vmatpush1.bf16.msra.mxu0 0
    %151 = vmatprep.subr.bf16.mxu0 0
    %152 = vmatpush1.bf16.msra.mxu0 0
    %153 = vmatprep.subr.bf16.mxu0 0
    %154 = vmatpush1.bf16.msra.mxu0 0
    %155 = vmatprep.subr.bf16.mxu0 0
    %156 = vmatpush1.bf16.msra.mxu0 0
    %157 = vmatprep.subr.bf16.mxu0 0
    %158 = vmatpush1.bf16.msra.mxu0 0
    %159 = vmatprep.subr.bf16.mxu0 0
    %160 = vmatpush1.bf16.msra.mxu0 0
    %161 = vmatprep.subr.bf16.mxu0 0
    %162 = vmatpush1.bf16.msra.mxu0 0
    %163 = vmatprep.subr.bf16.mxu0 0
    %164 = vmatpush1.bf16.msra.mxu0 0
    %165 = vmatprep.mubr.bf16.mxu0 0
    %166 = vmatmul.mubr.bf16.gmra.mrb[0].mxu0 %v61
    %v167 = vpop.f32.mrb[0].mxu0
    %v168 = vadd.f32 %v83, %v167
    %v169 = vpop.f32.mrb[0].mxu0
    %v170 = vpop.f32.mrb[0].mxu0
    %v171 = vpop.f32.mrb[0].mxu0
    %172 = vdwg.mxu0
    %v173 = vmax.f32 %v168, 0.0
    %v174 = vpack.c.bf16 %v173, %v173
    %s175 = scalar_lea.vmem [#allocation5], 64
    %v176 = vld [vmem:[%s175] sm:$0xf]
    %v177 = vld [vmem:[%s175 + $0x4] sm:$0xf]
    %v178 = vld [vmem:[%s175 + $0x8] sm:$0xf]
    %v179 = vld [vmem:[%s175 + $0xc] sm:$0xf]
    %v180 = vld [vmem:[%s175 + $0x10] sm:$0xf]
    %v181 = vld [vmem:[%s175 + $0x14] sm:$0xf]
    %v182 = vld [vmem:[%s175 + $0x18] sm:$0xf]
    %v183 = vld [vmem:[%s175 + $0x1c] sm:$0xf]
    %v184 = vld [vmem:[%s175 + $0x20] sm:$0xf]
    %v185 = vld [vmem:[%s175 + $0x24] sm:$0xf]
    %v186 = vld [vmem:[%s175 + $0x28] sm:$0xf]
    %v187 = vld [vmem:[%s175 + $0x2c] sm:$0xf]
    %v188 = vld [vmem:[%s175 + $0x30] sm:$0xf]
    %v189 = vld [vmem:[%s175 + $0x34] sm:$0xf]
    %v190 = vld [vmem:[%s175 + $0x38] sm:$0xf]
    %v191 = vld [vmem:[%s175 + $0x3c] sm:$0xf]
    %s192 = scalar_lea.vmem %s2, 1
    %v193 = vld [vmem:[%s192] sm:$0x1]
    %v195 = vlaneseq
    %v196 = vshrl.u32 %v195, 7
    %v197 = vsub.s32 0, %v196
    %v198 = vrot.slane %v193, %v197
    %v216 = vunpack.c.l.b16 %v176
    %v217 = vunpack.c.l.b16 %v177
    %v218 = vunpack.c.l.b16 %v178
    %v219 = vunpack.c.l.b16 %v179
    %v220 = vunpack.c.l.b16 %v180
    %v221 = vunpack.c.l.b16 %v181
    %v222 = vunpack.c.l.b16 %v182
    %v223 = vunpack.c.l.b16 %v183
    %v224 = vunpack.c.l.b16 %v184
    %v225 = vunpack.c.l.b16 %v185
    %v226 = vunpack.c.l.b16 %v186
    %v227 = vunpack.c.l.b16 %v187
    %v228 = vunpack.c.l.b16 %v188
    %v229 = vunpack.c.l.b16 %v189
    %v230 = vunpack.c.l.b16 %v190
    %v231 = vunpack.c.l.b16 %v191
    %v232 = vpack.c.b16 %v217, %v216
    %v233 = vpack.c.b16 %v219, %v218
    %v234 = vpack.c.b16 %v221, %v220
    %v235 = vpack.c.b16 %v223, %v222
    %v236 = vpack.c.b16 %v225, %v224
    %v237 = vpack.c.b16 %v227, %v226
    %v238 = vpack.c.b16 %v229, %v228
    %v239 = vpack.c.b16 %v231, %v230
    %248 = vmatprep.subr.bf16.mxu0 0
    %249 = vmatpush1.bf16.msra.mxu0 %v232
    %250 = vmatprep.subr.bf16.mxu0 0
    %251 = vmatpush1.bf16.msra.mxu0 %v233
    %252 = vmatprep.subr.bf16.mxu0 0
    %253 = vmatpush1.bf16.msra.mxu0 %v234
    %254 = vmatprep.subr.bf16.mxu0 0
    %255 = vmatpush1.bf16.msra.mxu0 %v235
    %256 = vmatprep.subr.bf16.mxu0 0
    %257 = vmatpush1.bf16.msra.mxu0 %v236
    %258 = vmatprep.subr.bf16.mxu0 0
    %259 = vmatpush1.bf16.msra.mxu0 %v237
    %260 = vmatprep.subr.bf16.mxu0 0
    %261 = vmatpush1.bf16.msra.mxu0 %v238
    %262 = vmatprep.subr.bf16.mxu0 0
    %263 = vmatpush1.bf16.msra.mxu0 %v239
    %264 = vmatprep.subr.bf16.mxu0 0
    %265 = vmatpush1.bf16.msra.mxu0 0
    %266 = vmatprep.subr.bf16.mxu0 0
    %267 = vmatpush1.bf16.msra.mxu0 0
    %268 = vmatprep.subr.bf16.mxu0 0
    %269 = vmatpush1.bf16.msra.mxu0 0
    %270 = vmatprep.subr.bf16.mxu0 0
    %271 = vmatpush1.bf16.msra.mxu0 0
    %272 = vmatprep.subr.bf16.mxu0 0
    %273 = vmatpush1.bf16.msra.mxu0 0
    %274 = vmatprep.subr.bf16.mxu0 0
    %275 = vmatpush1.bf16.msra.mxu0 0
    %276 = vmatprep.subr.bf16.mxu0 0
    %277 = vmatpush1.bf16.msra.mxu0 0
    %278 = vmatprep.subr.bf16.mxu0 0
    %279 = vmatpush1.bf16.msra.mxu0 0
    %280 = vmatprep.mubr.bf16.mxu0 0
    %281 = vmatmul.mubr.bf16.gmra.mrb[0].mxu0 %v174
    %v282 = vpop.f32.mrb[0].mxu0
    %v283 = vadd.f32 %v198, %v282
    %v284 = vpop.f32.mrb[0].mxu0
    %v285 = vpop.f32.mrb[0].mxu0
    %v286 = vpop.f32.mrb[0].mxu0
    %287 = vdwg.mxu0
    %v288 = vmax.f32 %v283, 0.0
    %v289 = vpack.c.bf16 %v288, %v288
    %s290 = scalar_lea.vmem [#allocation5], 128
    %v291 = vld [vmem:[%s290] sm:$0xf]
    %v292 = vld [vmem:[%s290 + $0x4] sm:$0xf]
    %v293 = vld [vmem:[%s290 + $0x8] sm:$0xf]
    %v294 = vld [vmem:[%s290 + $0xc] sm:$0xf]
    %v295 = vld [vmem:[%s290 + $0x10] sm:$0xf]
    %v296 = vld [vmem:[%s290 + $0x14] sm:$0xf]
    %v297 = vld [vmem:[%s290 + $0x18] sm:$0xf]
    %v298 = vld [vmem:[%s290 + $0x1c] sm:$0xf]
    %v299 = vld [vmem:[%s290 + $0x20] sm:$0xf]
    %v300 = vld [vmem:[%s290 + $0x24] sm:$0xf]
    %v301 = vld [vmem:[%s290 + $0x28] sm:$0xf]
    %v302 = vld [vmem:[%s290 + $0x2c] sm:$0xf]
    %v303 = vld [vmem:[%s290 + $0x30] sm:$0xf]
    %v304 = vld [vmem:[%s290 + $0x34] sm:$0xf]
    %v305 = vld [vmem:[%s290 + $0x38] sm:$0xf]
    %v306 = vld [vmem:[%s290 + $0x3c] sm:$0xf]
    %s307 = scalar_lea.vmem %s2, 2
    %v308 = vld [vmem:[%s307] sm:$0x1]
    %v310 = vlaneseq
    %v311 = vshrl.u32 %v310, 7
    %v312 = vsub.s32 0, %v311
    %v313 = vrot.slane %v308, %v312
    %v331 = vunpack.c.l.b16 %v291
    %v332 = vunpack.c.l.b16 %v292
    %v333 = vunpack.c.l.b16 %v293
    %v334 = vunpack.c.l.b16 %v294
    %v335 = vunpack.c.l.b16 %v295
    %v336 = vunpack.c.l.b16 %v296
    %v337 = vunpack.c.l.b16 %v297
    %v338 = vunpack.c.l.b16 %v298
    %v339 = vunpack.c.l.b16 %v299
    %v340 = vunpack.c.l.b16 %v300
    %v341 = vunpack.c.l.b16 %v301
    %v342 = vunpack.c.l.b16 %v302
    %v343 = vunpack.c.l.b16 %v303
    %v344 = vunpack.c.l.b16 %v304
    %v345 = vunpack.c.l.b16 %v305
    %v346 = vunpack.c.l.b16 %v306
    %v347 = vpack.c.b16 %v332, %v331
    %v348 = vpack.c.b16 %v334, %v333
    %v349 = vpack.c.b16 %v336, %v335
    %v350 = vpack.c.b16 %v338, %v337
    %v351 = vpack.c.b16 %v340, %v339
    %v352 = vpack.c.b16 %v342, %v341
    %v353 = vpack.c.b16 %v344, %v343
    %v354 = vpack.c.b16 %v346, %v345
    %363 = vmatprep.subr.bf16.mxu0 0
    %364 = vmatpush1.bf16.msra.mxu0 %v347
    %365 = vmatprep.subr.bf16.mxu0 0
    %366 = vmatpush1.bf16.msra.mxu0 %v348
    %367 = vmatprep.subr.bf16.mxu0 0
    %368 = vmatpush1.bf16.msra.mxu0 %v349
    %369 = vmatprep.subr.bf16.mxu0 0
    %370 = vmatpush1.bf16.msra.mxu0 %v350
    %371 = vmatprep.subr.bf16.mxu0 0
    %372 = vmatpush1.bf16.msra.mxu0 %v351
    %373 = vmatprep.subr.bf16.mxu0 0
    %374 = vmatpush1.bf16.msra.mxu0 %v352
    %375 = vmatprep.subr.bf16.mxu0 0
    %376 = vmatpush1.bf16.msra.mxu0 %v353
    %377 = vmatprep.subr.bf16.mxu0 0
    %378 = vmatpush1.bf16.msra.mxu0 %v354
    %379 = vmatprep.subr.bf16.mxu0 0
    %380 = vmatpush1.bf16.msra.mxu0 0
    %381 = vmatprep.subr.bf16.mxu0 0
    %382 = vmatpush1.bf16.msra.mxu0 0
    %383 = vmatprep.subr.bf16.mxu0 0
    %384 = vmatpush1.bf16.msra.mxu0 0
    %385 = vmatprep.subr.bf16.mxu0 0
    %386 = vmatpush1.bf16.msra.mxu0 0
    %387 = vmatprep.subr.bf16.mxu0 0
    %388 = vmatpush1.bf16.msra.mxu0 0
    %389 = vmatprep.subr.bf16.mxu0 0
    %390 = vmatpush1.bf16.msra.mxu0 0
    %391 = vmatprep.subr.bf16.mxu0 0
    %392 = vmatpush1.bf16.msra.mxu0 0
    %393 = vmatprep.subr.bf16.mxu0 0
    %394 = vmatpush1.bf16.msra.mxu0 0
    %395 = vmatprep.mubr.bf16.mxu0 0
    %396 = vmatmul.mubr.bf16.gmra.mrb[0].mxu0 %v289
    %v397 = vpop.f32.mrb[0].mxu0
    %v398 = vadd.f32 %v313, %v397
    %v399 = vpop.f32.mrb[0].mxu0
    %v400 = vpop.f32.mrb[0].mxu0
    %v401 = vpop.f32.mrb[0].mxu0
    %402 = vdwg.mxu0
    %v403 = vmax.f32 %v398, 0.0
    %v404 = vpack.c.bf16 %v403, %v403
    %s405 = scalar_lea.vmem [#allocation5], 192
    %v406 = vld [vmem:[%s405] sm:$0xf]
    %v407 = vld [vmem:[%s405 + $0x4] sm:$0xf]
    %v408 = vld [vmem:[%s405 + $0x8] sm:$0xf]
    %v409 = vld [vmem:[%s405 + $0xc] sm:$0xf]
    %v410 = vld [vmem:[%s405 + $0x10] sm:$0xf]
    %v411 = vld [vmem:[%s405 + $0x14] sm:$0xf]
    %v412 = vld [vmem:[%s405 + $0x18] sm:$0xf]
    %v413 = vld [vmem:[%s405 + $0x1c] sm:$0xf]
    %v414 = vld [vmem:[%s405 + $0x20] sm:$0xf]
    %v415 = vld [vmem:[%s405 + $0x24] sm:$0xf]
    %v416 = vld [vmem:[%s405 + $0x28] sm:$0xf]
    %v417 = vld [vmem:[%s405 + $0x2c] sm:$0xf]
    %v418 = vld [vmem:[%s405 + $0x30] sm:$0xf]
    %v419 = vld [vmem:[%s405 + $0x34] sm:$0xf]
    %v420 = vld [vmem:[%s405 + $0x38] sm:$0xf]
    %v421 = vld [vmem:[%s405 + $0x3c] sm:$0xf]
    %s422 = scalar_lea.vmem %s2, 3
    %v423 = vld [vmem:[%s422] sm:$0x1]
    %v425 = vlaneseq
    %v426 = vshrl.u32 %v425, 7
    %v427 = vsub.s32 0, %v426
    %v428 = vrot.slane %v423, %v427
    %v446 = vunpack.c.l.b16 %v406
    %v447 = vunpack.c.l.b16 %v407
    %v448 = vunpack.c.l.b16 %v408
    %v449 = vunpack.c.l.b16 %v409
    %v450 = vunpack.c.l.b16 %v410
    %v451 = vunpack.c.l.b16 %v411
    %v452 = vunpack.c.l.b16 %v412
    %v453 = vunpack.c.l.b16 %v413
    %v454 = vunpack.c.l.b16 %v414
    %v455 = vunpack.c.l.b16 %v415
    %v456 = vunpack.c.l.b16 %v416
    %v457 = vunpack.c.l.b16 %v417
    %v458 = vunpack.c.l.b16 %v418
    %v459 = vunpack.c.l.b16 %v419
    %v460 = vunpack.c.l.b16 %v420
    %v461 = vunpack.c.l.b16 %v421
    %v462 = vpack.c.b16 %v447, %v446
    %v463 = vpack.c.b16 %v449, %v448
    %v464 = vpack.c.b16 %v451, %v450
    %v465 = vpack.c.b16 %v453, %v452
    %v466 = vpack.c.b16 %v455, %v454
    %v467 = vpack.c.b16 %v457, %v456
    %v468 = vpack.c.b16 %v459, %v458
    %v469 = vpack.c.b16 %v461, %v460
    %478 = vmatprep.subr.bf16.mxu0 0
    %479 = vmatpush1.bf16.msra.mxu0 %v462
    %480 = vmatprep.subr.bf16.mxu0 0
    %481 = vmatpush1.bf16.msra.mxu0 %v463
    %482 = vmatprep.subr.bf16.mxu0 0
    %483 = vmatpush1.bf16.msra.mxu0 %v464
    %484 = vmatprep.subr.bf16.mxu0 0
    %485 = vmatpush1.bf16.msra.mxu0 %v465
    %486 = vmatprep.subr.bf16.mxu0 0
    %487 = vmatpush1.bf16.msra.mxu0 %v466
    %488 = vmatprep.subr.bf16.mxu0 0
    %489 = vmatpush1.bf16.msra.mxu0 %v467
    %490 = vmatprep.subr.bf16.mxu0 0
    %491 = vmatpush1.bf16.msra.mxu0 %v468
    %492 = vmatprep.subr.bf16.mxu0 0
    %493 = vmatpush1.bf16.msra.mxu0 %v469
    %494 = vmatprep.subr.bf16.mxu0 0
    %495 = vmatpush1.bf16.msra.mxu0 0
    %496 = vmatprep.subr.bf16.mxu0 0
    %497 = vmatpush1.bf16.msra.mxu0 0
    %498 = vmatprep.subr.bf16.mxu0 0
    %499 = vmatpush1.bf16.msra.mxu0 0
    %500 = vmatprep.subr.bf16.mxu0 0
    %501 = vmatpush1.bf16.msra.mxu0 0
    %502 = vmatprep.subr.bf16.mxu0 0
    %503 = vmatpush1.bf16.msra.mxu0 0
    %504 = vmatprep.subr.bf16.mxu0 0
    %505 = vmatpush1.bf16.msra.mxu0 0
    %506 = vmatprep.subr.bf16.mxu0 0
    %507 = vmatpush1.bf16.msra.mxu0 0
    %508 = vmatprep.subr.bf16.mxu0 0
    %509 = vmatpush1.bf16.msra.mxu0 0
    %510 = vmatprep.mubr.bf16.mxu0 0
    %511 = vmatmul.mubr.bf16.gmra.mrb[0].mxu0 %v404
    %v512 = vpop.f32.mrb[0].mxu0
    %v513 = vadd.f32 %v428, %v512
    %v514 = vpop.f32.mrb[0].mxu0
    %v515 = vpop.f32.mrb[0].mxu0
    %v516 = vpop.f32.mrb[0].mxu0
    %517 = vdwg.mxu0
    %v518 = vmax.f32 %v513, 0.0
    %v519 = vpack.c.bf16 %v518, %v518
    %s520 = scalar_lea.vmem [#allocation5], 256
    %v521 = vld [vmem:[%s520] sm:$0xf]
    %v522 = vld [vmem:[%s520 + $0x4] sm:$0xf]
    %v523 = vld [vmem:[%s520 + $0x8] sm:$0xf]
    %v524 = vld [vmem:[%s520 + $0xc] sm:$0xf]
    %v525 = vld [vmem:[%s520 + $0x10] sm:$0xf]
    %v526 = vld [vmem:[%s520 + $0x14] sm:$0xf]
    %v527 = vld [vmem:[%s520 + $0x18] sm:$0xf]
    %v528 = vld [vmem:[%s520 + $0x1c] sm:$0xf]
    %v529 = vld [vmem:[%s520 + $0x20] sm:$0xf]
    %v530 = vld [vmem:[%s520 + $0x24] sm:$0xf]
    %v531 = vld [vmem:[%s520 + $0x28] sm:$0xf]
    %v532 = vld [vmem:[%s520 + $0x2c] sm:$0xf]
    %v533 = vld [vmem:[%s520 + $0x30] sm:$0xf]
    %v534 = vld [vmem:[%s520 + $0x34] sm:$0xf]
    %v535 = vld [vmem:[%s520 + $0x38] sm:$0xf]
    %v536 = vld [vmem:[%s520 + $0x3c] sm:$0xf]
    %s537 = scalar_lea.vmem %s2, 4
    %v538 = vld [vmem:[%s537] sm:$0x1]
    %v540 = vlaneseq
    %v541 = vshrl.u32 %v540, 7
    %v542 = vsub.s32 0, %v541
    %v543 = vrot.slane %v538, %v542
    %v561 = vunpack.c.l.b16 %v521
    %v562 = vunpack.c.l.b16 %v522
    %v563 = vunpack.c.l.b16 %v523
    %v564 = vunpack.c.l.b16 %v524
    %v565 = vunpack.c.l.b16 %v525
    %v566 = vunpack.c.l.b16 %v526
    %v567 = vunpack.c.l.b16 %v527
    %v568 = vunpack.c.l.b16 %v528
    %v569 = vunpack.c.l.b16 %v529
    %v570 = vunpack.c.l.b16 %v530
    %v571 = vunpack.c.l.b16 %v531
    %v572 = vunpack.c.l.b16 %v532
    %v573 = vunpack.c.l.b16 %v533
    %v574 = vunpack.c.l.b16 %v534
    %v575 = vunpack.c.l.b16 %v535
    %v576 = vunpack.c.l.b16 %v536
    %v577 = vpack.c.b16 %v562, %v561
    %v578 = vpack.c.b16 %v564, %v563
    %v579 = vpack.c.b16 %v566, %v565
    %v580 = vpack.c.b16 %v568, %v567
    %v581 = vpack.c.b16 %v570, %v569
    %v582 = vpack.c.b16 %v572, %v571
    %v583 = vpack.c.b16 %v574, %v573
    %v584 = vpack.c.b16 %v576, %v575
    %593 = vmatprep.subr.bf16.mxu0 0
    %594 = vmatpush1.bf16.msra.mxu0 %v577
    %595 = vmatprep.subr.bf16.mxu0 0
    %596 = vmatpush1.bf16.msra.mxu0 %v578
    %597 = vmatprep.subr.bf16.mxu0 0
    %598 = vmatpush1.bf16.msra.mxu0 %v579
    %599 = vmatprep.subr.bf16.mxu0 0
    %600 = vmatpush1.bf16.msra.mxu0 %v580
    %601 = vmatprep.subr.bf16.mxu0 0
    %602 = vmatpush1.bf16.msra.mxu0 %v581
    %603 = vmatprep.subr.bf16.mxu0 0
    %604 = vmatpush1.bf16.msra.mxu0 %v582
    %605 = vmatprep.subr.bf16.mxu0 0
    %606 = vmatpush1.bf16.msra.mxu0 %v583
    %607 = vmatprep.subr.bf16.mxu0 0
    %608 = vmatpush1.bf16.msra.mxu0 %v584
    %609 = vmatprep.subr.bf16.mxu0 0
    %610 = vmatpush1.bf16.msra.mxu0 0
    %611 = vmatprep.subr.bf16.mxu0 0
    %612 = vmatpush1.bf16.msra.mxu0 0
    %613 = vmatprep.subr.bf16.mxu0 0
    %614 = vmatpush1.bf16.msra.mxu0 0
    %615 = vmatprep.subr.bf16.mxu0 0
    %616 = vmatpush1.bf16.msra.mxu0 0
    %617 = vmatprep.subr.bf16.mxu0 0
    %618 = vmatpush1.bf16.msra.mxu0 0
    %619 = vmatprep.subr.bf16.mxu0 0
    %620 = vmatpush1.bf16.msra.mxu0 0
    %621 = vmatprep.subr.bf16.mxu0 0
    %622 = vmatpush1.bf16.msra.mxu0 0
    %623 = vmatprep.subr.bf16.mxu0 0
    %624 = vmatpush1.bf16.msra.mxu0 0
    %625 = vmatprep.mubr.bf16.mxu0 0
    %626 = vmatmul.mubr.bf16.gmra.mrb[0].mxu0 %v519
    %v627 = vpop.f32.mrb[0].mxu0
    %v628 = vadd.f32 %v543, %v627
    %v629 = vpop.f32.mrb[0].mxu0
    %v630 = vpop.f32.mrb[0].mxu0
    %v631 = vpop.f32.mrb[0].mxu0
    %632 = vdwg.mxu0
    %v633 = vmax.f32 %v628, 0.0
    %v634 = vpack.c.bf16 %v633, %v633
    %s635 = scalar_lea.vmem [#allocation5], 320
    %v636 = vld [vmem:[%s635] sm:$0xf]
    %v637 = vld [vmem:[%s635 + $0x4] sm:$0xf]
    %v638 = vld [vmem:[%s635 + $0x8] sm:$0xf]
    %v639 = vld [vmem:[%s635 + $0xc] sm:$0xf]
    %v640 = vld [vmem:[%s635 + $0x10] sm:$0xf]
    %v641 = vld [vmem:[%s635 + $0x14] sm:$0xf]
    %v642 = vld [vmem:[%s635 + $0x18] sm:$0xf]
    %v643 = vld [vmem:[%s635 + $0x1c] sm:$0xf]
    %v644 = vld [vmem:[%s635 + $0x20] sm:$0xf]
    %v645 = vld [vmem:[%s635 + $0x24] sm:$0xf]
    %v646 = vld [vmem:[%s635 + $0x28] sm:$0xf]
    %v647 = vld [vmem:[%s635 + $0x2c] sm:$0xf]
    %v648 = vld [vmem:[%s635 + $0x30] sm:$0xf]
    %v649 = vld [vmem:[%s635 + $0x34] sm:$0xf]
    %v650 = vld [vmem:[%s635 + $0x38] sm:$0xf]
    %v651 = vld [vmem:[%s635 + $0x3c] sm:$0xf]
    %s652 = scalar_lea.vmem %s2, 5
    %v653 = vld [vmem:[%s652] sm:$0x1]
    %v655 = vlaneseq
    %v656 = vshrl.u32 %v655, 7
    %v657 = vsub.s32 0, %v656
    %v658 = vrot.slane %v653, %v657
    %v676 = vunpack.c.l.b16 %v636
    %v677 = vunpack.c.l.b16 %v637
    %v678 = vunpack.c.l.b16 %v638
    %v679 = vunpack.c.l.b16 %v639
    %v680 = vunpack.c.l.b16 %v640
    %v681 = vunpack.c.l.b16 %v641
    %v682 = vunpack.c.l.b16 %v642
    %v683 = vunpack.c.l.b16 %v643
    %v684 = vunpack.c.l.b16 %v644
    %v685 = vunpack.c.l.b16 %v645
    %v686 = vunpack.c.l.b16 %v646
    %v687 = vunpack.c.l.b16 %v647
    %v688 = vunpack.c.l.b16 %v648
    %v689 = vunpack.c.l.b16 %v649
    %v690 = vunpack.c.l.b16 %v650
    %v691 = vunpack.c.l.b16 %v651
    %v692 = vpack.c.b16 %v677, %v676
    %v693 = vpack.c.b16 %v679, %v678
    %v694 = vpack.c.b16 %v681, %v680
    %v695 = vpack.c.b16 %v683, %v682
    %v696 = vpack.c.b16 %v685, %v684
    %v697 = vpack.c.b16 %v687, %v686
    %v698 = vpack.c.b16 %v689, %v688
    %v699 = vpack.c.b16 %v691, %v690
    %708 = vmatprep.subr.bf16.mxu0 0
    %709 = vmatpush1.bf16.msra.mxu0 %v692
    %710 = vmatprep.subr.bf16.mxu0 0
    %711 = vmatpush1.bf16.msra.mxu0 %v693
    %712 = vmatprep.subr.bf16.mxu0 0
    %713 = vmatpush1.bf16.msra.mxu0 %v694
    %714 = vmatprep.subr.bf16.mxu0 0
    %715 = vmatpush1.bf16.msra.mxu0 %v695
    %716 = vmatprep.subr.bf16.mxu0 0
    %717 = vmatpush1.bf16.msra.mxu0 %v696
    %718 = vmatprep.subr.bf16.mxu0 0
    %719 = vmatpush1.bf16.msra.mxu0 %v697
    %720 = vmatprep.subr.bf16.mxu0 0
    %721 = vmatpush1.bf16.msra.mxu0 %v698
    %722 = vmatprep.subr.bf16.mxu0 0
    %723 = vmatpush1.bf16.msra.mxu0 %v699
    %724 = vmatprep.subr.bf16.mxu0 0
    %725 = vmatpush1.bf16.msra.mxu0 0
    %726 = vmatprep.subr.bf16.mxu0 0
    %727 = vmatpush1.bf16.msra.mxu0 0
    %728 = vmatprep.subr.bf16.mxu0 0
    %729 = vmatpush1.bf16.msra.mxu0 0
    %730 = vmatprep.subr.bf16.mxu0 0
    %731 = vmatpush1.bf16.msra.mxu0 0
    %732 = vmatprep.subr.bf16.mxu0 0
    %733 = vmatpush1.bf16.msra.mxu0 0
    %734 = vmatprep.subr.bf16.mxu0 0
    %735 = vmatpush1.bf16.msra.mxu0 0
    %736 = vmatprep.subr.bf16.mxu0 0
    %737 = vmatpush1.bf16.msra.mxu0 0
    %738 = vmatprep.subr.bf16.mxu0 0
    %739 = vmatpush1.bf16.msra.mxu0 0
    %740 = vmatprep.mubr.bf16.mxu0 0
    %741 = vmatmul.mubr.bf16.gmra.mrb[0].mxu0 %v634
    %v742 = vpop.f32.mrb[0].mxu0
    %v743 = vadd.f32 %v658, %v742
    %v744 = vpop.f32.mrb[0].mxu0
    %v745 = vpop.f32.mrb[0].mxu0
    %v746 = vpop.f32.mrb[0].mxu0
    %747 = vdwg.mxu0
    %748 = vst [vmem:[#allocation7] sm:$0xff] %v743
    // Predicated region
    $region22: #{tpu_custom_call.1} parent=1 // pred_check
      _
    $region23: #{tpu_custom_call.1} parent=1 // pred_check_branch
      %750 = sbr.rel (0) target = $region25
    $region24: #{tpu_custom_call.1} parent=1 // pred_region
      %s752 = ssub.s32 128, 128
      %753 = vsyncadd [#allocation4], %s752
      %s755 = sshll.u32 [#allocation7], 4
      %s756 = int_to_ptr.vmem [resolvable:$true] %s755
      %758 = dma.vmem_to_hbm [thread:$0]  %s756, 128, %s3, [#allocation4]
    $region25: #{tpu_custom_call.1} parent=1 // pred_fallthru
      _
    // Predicated region
    $region26: #{tpu_custom_call.1} parent=1 // pred_check
      _
    $region27: #{tpu_custom_call.1} parent=1 // pred_check_branch
      %760 = sbr.rel (0) target = $region29
    $region28: #{tpu_custom_call.1} parent=1 // pred_region
      %761 = dma.done [#allocation4], 128
    $region29: #{tpu_custom_call.1} parent=1 // pred_fallthru
      _
    %762 = vsyncpa [#allocation3], 1
    %763 = vsyncpa [#allocation6], 1
    %764 = vsyncpa [#allocation4], 1

</llo_original>
